<compile_context>
chip_gen: v7x
topology: tpu7x:2x2x1
jax: 0.10.0
libtpu: 0.0.40
codegen_flags: <defaults>
</compile_context>

<pallas_src>
import functools

import jax
import jax.numpy as jnp
from jax import lax
from jax.experimental import pallas as pl
from jax.experimental.pallas import tpu as pltpu


# ----------------------------- Pallas kernels -----------------------------

def _linear_bias_single_kernel(x_ref, w_ref, b_ref, o_ref):
    # Single pass over K: o = x @ w + b.  x/w are bf16, f32 MXU accumulation,
    # bias added on the VPU in the same pass.
    o_ref[...] = (jnp.dot(x_ref[...], w_ref[...],
                          preferred_element_type=jnp.float32)
                  + b_ref[...]).astype(o_ref.dtype)


def _linear_bias_acc_kernel(x_ref, w_ref, b_ref, o_ref, acc_ref):
    # K-tiled fallback (only used when a full-K tile does not fit in VMEM).
    # Bias is folded into the accumulator at k == 0 so the epilogue is a cast.
    k = pl.program_id(2)

    @pl.when(k == 0)
    def _():
        acc_ref[...] = jnp.broadcast_to(b_ref[...],
                                        acc_ref.shape).astype(jnp.float32)

    acc_ref[...] += jnp.dot(x_ref[...], w_ref[...],
                            preferred_element_type=jnp.float32)

    @pl.when(k == pl.num_programs(2) - 1)
    def _():
        o_ref[...] = acc_ref[...].astype(o_ref.dtype)


def _weight_reduce_kernel(gt_ref, wt_ref, o_ref):
    # w_red_t = g.T @ weight_orig.T -> (Cpad, Dout): plain NN matmul,
    # lane-dense output, no transposed-operand dot_generals.
    o_ref[...] = jnp.dot(gt_ref[...], wt_ref[...],
                         preferred_element_type=jnp.float32)


def _train_tile_kernel(x_ref, g_ref, wred_ref, b_ref, o_ref):
    # Per M-tile:  reduced = x @ g_pad            (tm, Cpad)
    #              out     = reduced @ w_red_t + b (tm, Dout)   lane-dense
    reduced = jnp.dot(x_ref[...], g_ref[...],
                      preferred_element_type=jnp.float32)
    o_ref[...] = (jnp.dot(reduced, wred_ref[...],
                          preferred_element_type=jnp.float32)
                  + b_ref[...]).astype(o_ref.dtype)


# ------------------------------- wrappers --------------------------------

_TM_PREFS = (256, 128, 64, 32, 16, 8)
_TN_PREFS = (512, 256, 128)


def _pick_tile(dim, prefs):
    # Largest preferred tile that divides the dim; otherwise the full extent
    # (full-extent blocks are always legal w.r.t. (8,128) tiling).
    for p in prefs:
        if dim >= p and dim % p == 0:
            return p
    return dim


def linear_pallas(x, w_t, b, *, vmem_budget_bytes=10 * 1024 * 1024):
    """y = x @ w_t + b with w_t laid out (Din, Dout); bf16 MXU, f32 accumulate.

    The VMEM budget is kept conservative (<= 10 MiB of double-buffered tiles)
    so the default scoped limit is fine on all of v5e (16 MiB), v6e and v7x
    (32 MiB scoped / 64 MiB physical).
    """
    M, K = x.shape
    K2, N = w_t.shape
    assert K == K2, (K, K2)
    if b is None:
        b = jnp.zeros((N,), jnp.float32)
    xb = x.astype(jnp.bfloat16)
    wb = w_t.astype(jnp.bfloat16)          # no-op if the caller pre-cast it
    b2 = b.astype(jnp.float32).reshape(1, N)

    tm = _pick_tile(M, _TM_PREFS)
    tn = _pick_tile(N, _TN_PREFS)

    def est_bytes(tk_):
        # double-buffered bf16 x/w tiles + double-buffered f32 out tile + bias
        return (2 * (tm * tk_ + tk_ * tn) * 2
                + 2 * tm * tn * 4 + tm * tn * 4 + 2 * tn * 4)

    if est_bytes(K) <= vmem_budget_bytes:
        # Full-K single pass: no K grid axis, no accumulator scratch, no
        # k==0 / k==last branches; both grid axes parallel (megacore).
        grid = (M // tm, N // tn)
        return pl.pallas_call(
            _linear_bias_single_kernel,
            out_shape=jax.ShapeDtypeStruct((M, N), jnp.float32),
            grid_spec=pltpu.PrefetchScalarGridSpec(
                num_scalar_prefetch=0, grid=grid,
                in_specs=[pl.BlockSpec((tm, K), lambda i, j: (i, 0)),
                          pl.BlockSpec((K, tn), lambda i, j: (0, j)),
                          pl.BlockSpec((1, tn), lambda i, j: (0, j))],
                out_specs=pl.BlockSpec((tm, tn), lambda i, j: (i, j))),
            compiler_params=pltpu.CompilerParams(
                dimension_semantics=("parallel", "parallel")),
        )(xb, wb, b2)

    # Large K: tile the contraction and accumulate in a VMEM scratch.
    tk = None
    for cand in (2048, 1024, 512, 256, 128):
        if cand < K and K % cand == 0 and est_bytes(cand) <= vmem_budget_bytes:
            tk = cand
            break
    if tk is None:
        tk = _pick_tile(K, (512, 256, 128))
    grid = (M // tm, N // tn, K // tk)
    return pl.pallas_call(
        _linear_bias_acc_kernel,
        out_shape=jax.ShapeDtypeStruct((M, N), jnp.float32),
        grid_spec=pltpu.PrefetchScalarGridSpec(
            num_scalar_prefetch=0, grid=grid,
            in_specs=[pl.BlockSpec((tm, tk), lambda i, j, k: (i, k)),
                      pl.BlockSpec((tk, tn), lambda i, j, k: (k, j)),
                      pl.BlockSpec((1, tn), lambda i, j, k: (0, j))],
            out_specs=pl.BlockSpec((tm, tn), lambda i, j, k: (i, j)),
            scratch_shapes=[pltpu.VMEM((tm, tn), jnp.float32)]),
        compiler_params=pltpu.CompilerParams(
            dimension_semantics=("parallel", "parallel", "arbitrary")),
    )(xb, wb, b2)


def feature_grouping_train_pallas(x, w_t, b, g):
    """Training path: (x @ g) @ (weight_orig @ g).T + b, M-tiled + lane-dense."""
    M, K = x.shape
    K2, C = g.shape
    K3, N = w_t.shape
    assert K == K2 == K3, (K, K2, K3)
    if b is None:
        b = jnp.zeros((N,), jnp.float32)
    b2 = b.astype(jnp.float32).reshape(1, N)

    # Zero-pad n_cluster to a lane multiple; padding is exactly zero so the
    # matmul results are unchanged.
    c_pad = ((C + 127) // 128) * 128
    g_pad = jnp.pad(g, ((0, 0), (0, c_pad - C))) if c_pad != C else g
    g_t_pad = jnp.transpose(g_pad)            # (Cpad, K) -- tiny, done once

    # 1) Reduced weight as an NN matmul with a lane-dense (Cpad, Dout) output.
    w_red_t = pl.pallas_call(
        _weight_reduce_kernel,
        out_shape=jax.ShapeDtypeStruct((c_pad, N), jnp.float32),
        grid=(1,),
        in_specs=[pl.BlockSpec((c_pad, K), lambda i: (0, 0)),
                  pl.BlockSpec((K, N), lambda i: (0, 0))],
        out_specs=pl.BlockSpec((c_pad, N), lambda i: (0, 0)),
    )(g_t_pad, w_t)

    # 2) Fused reduce-x + reduced-linear, tiled over M; g_pad / w_red_t / bias
    #    stay resident in VMEM (constant index maps).
    tm = _pick_tile(M, _TM_PREFS)
    out = pl.pallas_call(
        _train_tile_kernel,
        out_shape=jax.ShapeDtypeStruct((M, N), jnp.float32),
        grid_spec=pltpu.PrefetchScalarGridSpec(
            num_scalar_prefetch=0, grid=(M // tm,),
            in_specs=[pl.BlockSpec((tm, K), lambda i: (i, 0)),
                      pl.BlockSpec((K, c_pad), lambda i: (0, 0)),
                      pl.BlockSpec((c_pad, N), lambda i: (0, 0)),
                      pl.BlockSpec((1, N), lambda i: (0, 0))],
            out_specs=pl.BlockSpec((tm, N), lambda i: (i, 0))),
        compiler_params=pltpu.CompilerParams(
            dimension_semantics=("parallel",)),
    )(x, g_pad, w_red_t, b2)

    # Functional stand-in for `self.weight_reduced.data = cluster.transform(W)`.
    w_reduced = jnp.transpose(w_red_t[:C, :])     # (Dout, C)
    return out, w_reduced


def feature_grouping_forward(params, x, cluster_g=None, training=False):
    """Matches FeatureGrouping.forward(x, cluster, training).

    `cluster_g` is the (in_features, n_cluster) mean-pooling grouping matrix
    standing in for the sklearn `cluster.transform` object used by the
    reference (FeatureAgglomeration-style column pooling).
    """
    if training:
        # TODO(synk): the original calls an arbitrary host-side numpy
        # `cluster.transform`; it is modeled as mean-pooling via `cluster_g`,
        # and the in-place update of self.weight_reduced.data is produced
        # functionally (second output of the train wrapper).
        out, _w_reduced = feature_grouping_train_pallas(
            x, params["w_t"], params["bias"], cluster_g)
        return out
    return linear_pallas(x, params["w_t_bf16"], params["bias"])


# --------------------------- params / reference ---------------------------

def init_feature_grouping_params(key, n_cluster, in_features, out_features,
                                 bias=True):
    stdv = 1.0 / (in_features ** 0.5)
    k1, k2, k3 = jax.random.split(key, 3)
    p = {
        "weight_orig": jax.random.uniform(
            k1, (out_features, in_features), jnp.float32, -stdv, stdv),
        "weight_reduced": jax.random.uniform(
            k2, (out_features, n_cluster), jnp.float32, -stdv, stdv),
        "bias": (jax.random.uniform(k3, (out_features,), jnp.float32,
                                    -stdv, stdv) if bias else None),
    }
    # Hoisted layout/dtype work (once at param prep, not per forward): the
    # weight is stored pre-transposed (Din, Dout) so the kernel output is
    # lane-dense on out_features, and a bf16 copy feeds the eval-path MXU.
    p["w_t"] = jnp.transpose(p["weight_orig"])
    p["w_t_bf16"] = p["w_t"].astype(jnp.bfloat16)
    return p


def mean_pool_grouping_matrix(labels, n_cluster, dtype=jnp.float32):
    """Column-mean-pooling matrix G: (x @ G)[:, c] = mean of x over cluster c."""
    onehot = (labels[:, None] == jnp.arange(n_cluster)[None, :]).astype(dtype)
    counts = jnp.maximum(jnp.sum(onehot, axis=0, keepdims=True), 1.0)
    return onehot / counts


def feature_grouping_reference(params, x, cluster_g=None, training=False):
    """Pure-JAX reference mirroring the PyTorch forward (f32 throughout)."""
    hp = lax.Precision.HIGHEST
    w = params["weight_orig"]
    b = params["bias"] if params["bias"] is not None else 0.0
    if training:
        reduced = jnp.dot(x, cluster_g, precision=hp)
        w_red = jnp.dot(w, cluster_g, precision=hp)
        return jnp.dot(reduced, w_red.T, precision=hp) + b
    return jnp.dot(x, w.T, precision=hp) + b


if __name__ == "__main__":
    n_cluster, in_features, out_features, batch = 32, 512, 256, 128
    key = jax.random.PRNGKey(0)
    kx, kp, kc = jax.random.split(key, 3)
    x = jax.random.normal(kx, (batch, in_features), jnp.float32)
    params = init_feature_grouping_params(kp, n_cluster, in_features,
                                          out_features)
    labels = jax.random.randint(kc, (in_features,), 0, n_cluster)
    g = mean_pool_grouping_matrix(labels, n_cluster)

    eval_fwd = jax.jit(functools.partial(feature_grouping_forward,
                                         training=False))
    train_fwd = jax.jit(functools.partial(feature_grouping_forward,
                                          training=True))

    out_eval = jax.block_until_ready(eval_fwd(params, x))
    out_train = jax.block_until_ready(train_fwd(params, x, g))

    assert out_eval.shape == (batch, out_features), out_eval.shape
    assert out_train.shape == (batch, out_features), out_train.shape

    ref_eval = feature_grouping_reference(params, x, training=False)
    ref_train = feature_grouping_reference(params, x, g, training=True)
    for name, got, ref in (("eval", out_eval, ref_eval),
                           ("train", out_train, ref_train)):
        if not jnp.allclose(got, ref, rtol=2e-2, atol=2e-2):
            raise AssertionError(
                f"{name} mismatch vs reference, max abs err = "
                f"{jnp.max(jnp.abs(got - ref))}")
    print("KERNEL_OK")
</pallas_src>

<mosaic_0001>
module attributes {stable_mosaic.version = 11 : i64} {
  func.func @_linear_bias_single_kernel(%arg0: i32, %arg1: i32, %arg2: memref<128x512xbf16, #tpu.memory_space<vmem>>, %arg3: memref<512x256xbf16, #tpu.memory_space<vmem>>, %arg4: memref<1x256xf32, #tpu.memory_space<vmem>>, %arg5: memref<128x256xf32, #tpu.memory_space<vmem>>) attributes {dimension_semantics = [#tpu.dimension_semantics<parallel>, #tpu.dimension_semantics<parallel>], iteration_bounds = array<i64: 1, 1>, scalar_prefetch = 0 : i64, scratch_operands = 0 : i64, tpu.core_type = #tpu.core_type<tc>, window_params = [{transform_indices = @transform_0, window_bounds = array<i64: 128, 512>}, {transform_indices = @transform_1, window_bounds = array<i64: 512, 256>}, {transform_indices = @transform_2, window_bounds = array<i64: 1, 256>}, {transform_indices = @transform_3, window_bounds = array<i64: 128, 256>}]} {
    %c0 = arith.constant 0 : index
    %c0_0 = arith.constant 0 : index
    %0 = vector.load %arg2[%c0, %c0_0] : memref<128x512xbf16, #tpu.memory_space<vmem>>, vector<128x512xbf16>
    %c0_1 = arith.constant 0 : index
    %c0_2 = arith.constant 0 : index
    %1 = vector.load %arg3[%c0_1, %c0_2] : memref<512x256xbf16, #tpu.memory_space<vmem>>, vector<512x256xbf16>
    %cst = arith.constant dense<0.000000e+00> : vector<128x256xf32>
    %2 = tpu.matmul %0, %1, %cst {dimension_numbers = #tpu.dot_dimension_numbers<[1], [0], [0], [1], [0, 0, 1, 1], [], []>} : vector<128x512xbf16>, vector<512x256xbf16>, vector<128x256xf32> -> vector<128x256xf32>
    %c0_3 = arith.constant 0 : index
    %c0_4 = arith.constant 0 : index
    %3 = vector.load %arg4[%c0_3, %c0_4] : memref<1x256xf32, #tpu.memory_space<vmem>>, vector<1x256xf32>
    %4 = vector.broadcast %3 : vector<1x256xf32> to vector<128x256xf32>
    %5 = arith.addf %2, %4 : vector<128x256xf32>
    %c0_5 = arith.constant 0 : index
    %c0_6 = arith.constant 0 : index
    %6 = vector.load %arg5[%c0_5, %c0_6] : memref<128x256xf32, #tpu.memory_space<vmem>>, vector<128x256xf32>
    tpu.vector_store %arg5[%c0_5, %c0_6], %5 {strides = array<i32>} : memref<128x256xf32, #tpu.memory_space<vmem>>, vector<128x256xf32>,
    return
  }
  func.func @transform_0(%arg0: i32, %arg1: i32) -> (i32, i32) {
    %c0_i32 = arith.constant 0 : i32
    %c0_i32_0 = arith.constant 0 : i32
    return %arg0, %c0_i32 : i32, i32
  }
  func.func @transform_1(%arg0: i32, %arg1: i32) -> (i32, i32) {
    %c0_i32 = arith.constant 0 : i32
    %c0_i32_0 = arith.constant 0 : i32
    return %c0_i32, %arg1 : i32, i32
  }
  func.func @transform_2(%arg0: i32, %arg1: i32) -> (i32, i32) {
    %c0_i32 = arith.constant 0 : i32
    %c0_i32_0 = arith.constant 0 : i32
    return %c0_i32, %arg1 : i32, i32
  }
  func.func @transform_3(%arg0: i32, %arg1: i32) -> (i32, i32) {
    %c0_i32 = arith.constant 0 : i32
    return %arg0, %arg1 : i32, i32
  }
}

</mosaic_0001>

<llo_original>
// kernel: feature_grouping_forward.1
$region0: #{feature_grouping_forward.1}
  #allocation0 [shape = 'u32[]', space=smem, size = 0x4, offset = 0x4, fixed_abs, tag = 'smem constant byte address 0x4 - core index']
  #allocation1 [shape = 'u32[144,128]{1,0:T(1,128)}', space=vmem, size = 0x12000, scoped, tag = 'internal scratch']
  %s0 = inlined_call_operand.vmem [shape: bf16[128,512], index: 0, kind: input, shape index: {}]
  %s1 = inlined_call_operand.vmem [shape: bf16[512,256], index: 1, kind: input, shape index: {}]
  %s2 = inlined_call_operand.vmem [shape: f32[1,256], index: 2, kind: input, shape index: {}]
  %s3 = inlined_call_operand.hbm [shape: f32[128,256], index: 3, kind: output, shape index: {}]
  %s4 = sld [smem:[#allocation0]]
  $region22: #{feature_grouping_forward.1} parent=0
    _
  %s6 = ssub.s32 1, %s4
  %s7 = scalar_select 0, %s6, %s4
  $region1: #{feature_grouping_forward.1} parent=0
    #allocation2 [shape = 'u8[131072]{0}', space=vmem, size = 0x20000, scoped, tag = 'output window, operand 0, single buffered']
    #allocation3 [shape = 's32[1]{0}', space=sflag, size = 0x4, scoped, tag = 'scoped memory for feature_grouping_forward.1']
    %8 = vsyncpa [#allocation3], 0
    // Predicated region
    $region2: #{feature_grouping_forward.1} parent=1 // pred_check
      _
    $region3: #{feature_grouping_forward.1} parent=1 // pred_check_branch
      %10 = sbr.rel (0) target = $region5
    $region4: #{feature_grouping_forward.1} parent=1 // pred_region
      _
    $region5: #{feature_grouping_forward.1} parent=1 // pred_fallthru
      _
    // Predicated region
    $region6: #{feature_grouping_forward.1} parent=1 // pred_check
      _
    $region7: #{feature_grouping_forward.1} parent=1 // pred_check_branch
      %12 = sbr.rel (0) target = $region9
    $region8: #{feature_grouping_forward.1} parent=1 // pred_region
      _
    $region9: #{feature_grouping_forward.1} parent=1 // pred_fallthru
      _
    // Predicated region
    $region10: #{feature_grouping_forward.1} parent=1 // pred_check
      _
    $region11: #{feature_grouping_forward.1} parent=1 // pred_check_branch
      %14 = sbr.rel (0) target = $region13
    $region12: #{feature_grouping_forward.1} parent=1 // pred_region
      _
    $region13: #{feature_grouping_forward.1} parent=1 // pred_fallthru
      _
    %v15 = vld [vmem:[%s0] sm:$0xff]
    %v16 = vld [vmem:[%s0 + $0x8] sm:$0xff]
    %v17 = vld [vmem:[%s0 + $0x10] sm:$0xff]
    %v18 = vld [vmem:[%s0 + $0x18] sm:$0xff]
    %v19 = vld [vmem:[%s0 + $0x20] sm:$0xff]
    %v20 = vld [vmem:[%s0 + $0x28] sm:$0xff]
    %v21 = vld [vmem:[%s0 + $0x30] sm:$0xff]
    %v22 = vld [vmem:[%s0 + $0x38] sm:$0xff]
    %v23 = vld [vmem:[%s0 + $0x40] sm:$0xff]
    %v24 = vld [vmem:[%s0 + $0x48] sm:$0xff]
    %v25 = vld [vmem:[%s0 + $0x50] sm:$0xff]
    %v26 = vld [vmem:[%s0 + $0x58] sm:$0xff]
    %v27 = vld [vmem:[%s0 + $0x60] sm:$0xff]
    %v28 = vld [vmem:[%s0 + $0x68] sm:$0xff]
    %v29 = vld [vmem:[%s0 + $0x70] sm:$0xff]
    %v30 = vld [vmem:[%s0 + $0x78] sm:$0xff]
    %v31 = vld [vmem:[%s0 + $0x80] sm:$0xff]
    %v32 = vld [vmem:[%s0 + $0x88] sm:$0xff]
    %v33 = vld [vmem:[%s0 + $0x90] sm:$0xff]
    %v34 = vld [vmem:[%s0 + $0x98] sm:$0xff]
    %v35 = vld [vmem:[%s0 + $0xa0] sm:$0xff]
    %v36 = vld [vmem:[%s0 + $0xa8] sm:$0xff]
    %v37 = vld [vmem:[%s0 + $0xb0] sm:$0xff]
    %v38 = vld [vmem:[%s0 + $0xb8] sm:$0xff]
    %v39 = vld [vmem:[%s0 + $0xc0] sm:$0xff]
    %v40 = vld [vmem:[%s0 + $0xc8] sm:$0xff]
    %v41 = vld [vmem:[%s0 + $0xd0] sm:$0xff]
    %v42 = vld [vmem:[%s0 + $0xd8] sm:$0xff]
    %v43 = vld [vmem:[%s0 + $0xe0] sm:$0xff]
    %v44 = vld [vmem:[%s0 + $0xe8] sm:$0xff]
    %v45 = vld [vmem:[%s0 + $0xf0] sm:$0xff]
    %v46 = vld [vmem:[%s0 + $0xf8] sm:$0xff]
    %v47 = vld [vmem:[%s1] sm:$0xff]
    %v48 = vld [vmem:[%s1 + $0x8] sm:$0xff]
    %v49 = vld [vmem:[%s1 + $0x10] sm:$0xff]
    %v50 = vld [vmem:[%s1 + $0x18] sm:$0xff]
    %v51 = vld [vmem:[%s1 + $0x20] sm:$0xff]
    %v52 = vld [vmem:[%s1 + $0x28] sm:$0xff]
    %v53 = vld [vmem:[%s1 + $0x30] sm:$0xff]
    %v54 = vld [vmem:[%s1 + $0x38] sm:$0xff]
    %v55 = vld [vmem:[%s1 + $0x40] sm:$0xff]
    %v56 = vld [vmem:[%s1 + $0x48] sm:$0xff]
    %v57 = vld [vmem:[%s1 + $0x50] sm:$0xff]
    %v58 = vld [vmem:[%s1 + $0x58] sm:$0xff]
    %v59 = vld [vmem:[%s1 + $0x60] sm:$0xff]
    %v60 = vld [vmem:[%s1 + $0x68] sm:$0xff]
    %v61 = vld [vmem:[%s1 + $0x70] sm:$0xff]
    %v62 = vld [vmem:[%s1 + $0x78] sm:$0xff]
    %v63 = vld [vmem:[%s1 + $0x80] sm:$0xff]
    %v64 = vld [vmem:[%s1 + $0x88] sm:$0xff]
    %v65 = vld [vmem:[%s1 + $0x90] sm:$0xff]
    %v66 = vld [vmem:[%s1 + $0x98] sm:$0xff]
    %v67 = vld [vmem:[%s1 + $0xa0] sm:$0xff]
    %v68 = vld [vmem:[%s1 + $0xa8] sm:$0xff]
    %v69 = vld [vmem:[%s1 + $0xb0] sm:$0xff]
    %v70 = vld [vmem:[%s1 + $0xb8] sm:$0xff]
    %v71 = vld [vmem:[%s1 + $0xc0] sm:$0xff]
    %v72 = vld [vmem:[%s1 + $0xc8] sm:$0xff]
    %v73 = vld [vmem:[%s1 + $0xd0] sm:$0xff]
    %v74 = vld [vmem:[%s1 + $0xd8] sm:$0xff]
    %v75 = vld [vmem:[%s1 + $0xe0] sm:$0xff]
    %v76 = vld [vmem:[%s1 + $0xe8] sm:$0xff]
    %v77 = vld [vmem:[%s1 + $0xf0] sm:$0xff]
    %v78 = vld [vmem:[%s1 + $0xf8] sm:$0xff]
    %v79 = vld [vmem:[%s1 + $0x100] sm:$0xff]
    %v80 = vld [vmem:[%s1 + $0x108] sm:$0xff]
    %v81 = vld [vmem:[%s1 + $0x110] sm:$0xff]
    %v82 = vld [vmem:[%s1 + $0x118] sm:$0xff]
    %v83 = vld [vmem:[%s1 + $0x120] sm:$0xff]
    %v84 = vld [vmem:[%s1 + $0x128] sm:$0xff]
    %v85 = vld [vmem:[%s1 + $0x130] sm:$0xff]
    %v86 = vld [vmem:[%s1 + $0x138] sm:$0xff]
    %v87 = vld [vmem:[%s1 + $0x140] sm:$0xff]
    %v88 = vld [vmem:[%s1 + $0x148] sm:$0xff]
    %v89 = vld [vmem:[%s1 + $0x150] sm:$0xff]
    %v90 = vld [vmem:[%s1 + $0x158] sm:$0xff]
    %v91 = vld [vmem:[%s1 + $0x160] sm:$0xff]
    %v92 = vld [vmem:[%s1 + $0x168] sm:$0xff]
    %v93 = vld [vmem:[%s1 + $0x170] sm:$0xff]
    %v94 = vld [vmem:[%s1 + $0x178] sm:$0xff]
    %v95 = vld [vmem:[%s1 + $0x180] sm:$0xff]
    %v96 = vld [vmem:[%s1 + $0x188] sm:$0xff]
    %v97 = vld [vmem:[%s1 + $0x190] sm:$0xff]
    %v98 = vld [vmem:[%s1 + $0x198] sm:$0xff]
    %v99 = vld [vmem:[%s1 + $0x1a0] sm:$0xff]
    %v100 = vld [vmem:[%s1 + $0x1a8] sm:$0xff]
    %v101 = vld [vmem:[%s1 + $0x1b0] sm:$0xff]
    %v102 = vld [vmem:[%s1 + $0x1b8] sm:$0xff]
    %v103 = vld [vmem:[%s1 + $0x1c0] sm:$0xff]
    %v104 = vld [vmem:[%s1 + $0x1c8] sm:$0xff]
    %v105 = vld [vmem:[%s1 + $0x1d0] sm:$0xff]
    %v106 = vld [vmem:[%s1 + $0x1d8] sm:$0xff]
    %v107 = vld [vmem:[%s1 + $0x1e0] sm:$0xff]
    %v108 = vld [vmem:[%s1 + $0x1e8] sm:$0xff]
    %v109 = vld [vmem:[%s1 + $0x1f0] sm:$0xff]
    %v110 = vld [vmem:[%s1 + $0x1f8] sm:$0xff]
    %v111 = vld [vmem:[%s2] sm:$0x3]
    %v113 = vlaneseq
    %v114 = vshrl.u32 %v113, 7
    %v115 = vsub.s32 0, %v114
    %v116 = vrot.slane %v111, %v115
    %v117 = vlaneseq
    %v118 = vshrl.u32 %v117, 7
    %v119 = vsub.s32 1, %v118
    %v120 = vrot.slane %v111, %v119
    %v155 = vunpack.c.l.b16 %v15
    %v156 = vunpack.c.h.b16 %v15
    %v157 = vunpack.c.l.b16 %v16
    %v158 = vunpack.c.h.b16 %v16
    %v159 = vunpack.c.l.b16 %v17
    %v160 = vunpack.c.h.b16 %v17
    %v161 = vunpack.c.l.b16 %v18
    %v162 = vunpack.c.h.b16 %v18
    %v163 = vunpack.c.l.b16 %v19
    %v164 = vunpack.c.h.b16 %v19
    %v165 = vunpack.c.l.b16 %v20
    %v166 = vunpack.c.h.b16 %v20
    %v167 = vunpack.c.l.b16 %v21
    %v168 = vunpack.c.h.b16 %v21
    %v169 = vunpack.c.l.b16 %v22
    %v170 = vunpack.c.h.b16 %v22
    %v171 = vunpack.c.l.b16 %v23
    %v172 = vunpack.c.h.b16 %v23
    %v173 = vunpack.c.l.b16 %v24
    %v174 = vunpack.c.h.b16 %v24
    %v175 = vunpack.c.l.b16 %v25
    %v176 = vunpack.c.h.b16 %v25
    %v177 = vunpack.c.l.b16 %v26
    %v178 = vunpack.c.h.b16 %v26
    %v179 = vunpack.c.l.b16 %v27
    %v180 = vunpack.c.h.b16 %v27
    %v181 = vunpack.c.l.b16 %v28
    %v182 = vunpack.c.h.b16 %v28
    %v183 = vunpack.c.l.b16 %v29
    %v184 = vunpack.c.h.b16 %v29
    %v185 = vunpack.c.l.b16 %v30
    %v186 = vunpack.c.h.b16 %v30
    %v187 = vunpack.c.l.b16 %v31
    %v188 = vunpack.c.h.b16 %v31
    %v189 = vunpack.c.l.b16 %v32
    %v190 = vunpack.c.h.b16 %v32
    %v191 = vunpack.c.l.b16 %v33
    %v192 = vunpack.c.h.b16 %v33
    %v193 = vunpack.c.l.b16 %v34
    %v194 = vunpack.c.h.b16 %v34
    %v195 = vunpack.c.l.b16 %v35
    %v196 = vunpack.c.h.b16 %v35
    %v197 = vunpack.c.l.b16 %v36
    %v198 = vunpack.c.h.b16 %v36
    %v199 = vunpack.c.l.b16 %v37
    %v200 = vunpack.c.h.b16 %v37
    %v201 = vunpack.c.l.b16 %v38
    %v202 = vunpack.c.h.b16 %v38
    %v203 = vunpack.c.l.b16 %v39
    %v204 = vunpack.c.h.b16 %v39
    %v205 = vunpack.c.l.b16 %v40
    %v206 = vunpack.c.h.b16 %v40
    %v207 = vunpack.c.l.b16 %v41
    %v208 = vunpack.c.h.b16 %v41
    %v209 = vunpack.c.l.b16 %v42
    %v210 = vunpack.c.h.b16 %v42
    %v211 = vunpack.c.l.b16 %v43
    %v212 = vunpack.c.h.b16 %v43
    %v213 = vunpack.c.l.b16 %v44
    %v214 = vunpack.c.h.b16 %v44
    %v215 = vunpack.c.l.b16 %v45
    %v216 = vunpack.c.h.b16 %v45
    %v217 = vunpack.c.l.b16 %v46
    %v218 = vunpack.c.h.b16 %v46
    %v219 = vpack.c.b16 %v159, %v155
    %v220 = vpack.c.b16 %v160, %v156
    %v221 = vpack.c.b16 %v161, %v157
    %v222 = vpack.c.b16 %v162, %v158
    %v223 = vpack.c.b16 %v167, %v163
    %v224 = vpack.c.b16 %v168, %v164
    %v225 = vpack.c.b16 %v169, %v165
    %v226 = vpack.c.b16 %v170, %v166
    %v227 = vpack.c.b16 %v175, %v171
    %v228 = vpack.c.b16 %v176, %v172
    %v229 = vpack.c.b16 %v177, %v173
    %v230 = vpack.c.b16 %v178, %v174
    %v231 = vpack.c.b16 %v183, %v179
    %v232 = vpack.c.b16 %v184, %v180
    %v233 = vpack.c.b16 %v185, %v181
    %v234 = vpack.c.b16 %v186, %v182
    %v235 = vpack.c.b16 %v191, %v187
    %v236 = vpack.c.b16 %v192, %v188
    %v237 = vpack.c.b16 %v193, %v189
    %v238 = vpack.c.b16 %v194, %v190
    %v239 = vpack.c.b16 %v199, %v195
    %v240 = vpack.c.b16 %v200, %v196
    %v241 = vpack.c.b16 %v201, %v197
    %v242 = vpack.c.b16 %v202, %v198
    %v243 = vpack.c.b16 %v207, %v203
    %v244 = vpack.c.b16 %v208, %v204
    %v245 = vpack.c.b16 %v209, %v205
    %v246 = vpack.c.b16 %v210, %v206
    %v247 = vpack.c.b16 %v215, %v211
    %v248 = vpack.c.b16 %v216, %v212
    %v249 = vpack.c.b16 %v217, %v213
    %v250 = vpack.c.b16 %v218, %v214
    %v347 = vunpack.c.l.b16 %v47
    %v348 = vunpack.c.h.b16 %v47
    %v349 = vunpack.c.l.b16 %v48
    %v350 = vunpack.c.h.b16 %v48
    %v351 = vunpack.c.l.b16 %v49
    %v352 = vunpack.c.h.b16 %v49
    %v353 = vunpack.c.l.b16 %v50
    %v354 = vunpack.c.h.b16 %v50
    %v355 = vunpack.c.l.b16 %v51
    %v356 = vunpack.c.h.b16 %v51
    %v357 = vunpack.c.l.b16 %v52
    %v358 = vunpack.c.h.b16 %v52
    %v359 = vunpack.c.l.b16 %v53
    %v360 = vunpack.c.h.b16 %v53
    %v361 = vunpack.c.l.b16 %v54
    %v362 = vunpack.c.h.b16 %v54
    %v363 = vunpack.c.l.b16 %v55
    %v364 = vunpack.c.h.b16 %v55
    %v365 = vunpack.c.l.b16 %v56
    %v366 = vunpack.c.h.b16 %v56
    %v367 = vunpack.c.l.b16 %v57
    %v368 = vunpack.c.h.b16 %v57
    %v369 = vunpack.c.l.b16 %v58
    %v370 = vunpack.c.h.b16 %v58
    %v371 = vunpack.c.l.b16 %v59
    %v372 = vunpack.c.h.b16 %v59
    %v373 = vunpack.c.l.b16 %v60
    %v374 = vunpack.c.h.b16 %v60
    %v375 = vunpack.c.l.b16 %v61
    %v376 = vunpack.c.h.b16 %v61
    %v377 = vunpack.c.l.b16 %v62
    %v378 = vunpack.c.h.b16 %v62
    %v379 = vunpack.c.l.b16 %v63
    %v380 = vunpack.c.h.b16 %v63
    %v381 = vunpack.c.l.b16 %v64
    %v382 = vunpack.c.h.b16 %v64
    %v383 = vunpack.c.l.b16 %v65
    %v384 = vunpack.c.h.b16 %v65
    %v385 = vunpack.c.l.b16 %v66
    %v386 = vunpack.c.h.b16 %v66
    %v387 = vunpack.c.l.b16 %v67
    %v388 = vunpack.c.h.b16 %v67
    %v389 = vunpack.c.l.b16 %v68
    %v390 = vunpack.c.h.b16 %v68
    %v391 = vunpack.c.l.b16 %v69
    %v392 = vunpack.c.h.b16 %v69
    %v393 = vunpack.c.l.b16 %v70
    %v394 = vunpack.c.h.b16 %v70
    %v395 = vunpack.c.l.b16 %v71
    %v396 = vunpack.c.h.b16 %v71
    %v397 = vunpack.c.l.b16 %v72
    %v398 = vunpack.c.h.b16 %v72
    %v399 = vunpack.c.l.b16 %v73
    %v400 = vunpack.c.h.b16 %v73
    %v401 = vunpack.c.l.b16 %v74
    %v402 = vunpack.c.h.b16 %v74
    %v403 = vunpack.c.l.b16 %v75
    %v404 = vunpack.c.h.b16 %v75
    %v405 = vunpack.c.l.b16 %v76
    %v406 = vunpack.c.h.b16 %v76
    %v407 = vunpack.c.l.b16 %v77
    %v408 = vunpack.c.h.b16 %v77
    %v409 = vunpack.c.l.b16 %v78
    %v410 = vunpack.c.h.b16 %v78
    %v411 = vunpack.c.l.b16 %v79
    %v412 = vunpack.c.h.b16 %v79
    %v413 = vunpack.c.l.b16 %v80
    %v414 = vunpack.c.h.b16 %v80
    %v415 = vunpack.c.l.b16 %v81
    %v416 = vunpack.c.h.b16 %v81
    %v417 = vunpack.c.l.b16 %v82
    %v418 = vunpack.c.h.b16 %v82
    %v419 = vunpack.c.l.b16 %v83
    %v420 = vunpack.c.h.b16 %v83
    %v421 = vunpack.c.l.b16 %v84
    %v422 = vunpack.c.h.b16 %v84
    %v423 = vunpack.c.l.b16 %v85
    %v424 = vunpack.c.h.b16 %v85
    %v425 = vunpack.c.l.b16 %v86
    %v426 = vunpack.c.h.b16 %v86
    %v427 = vunpack.c.l.b16 %v87
    %v428 = vunpack.c.h.b16 %v87
    %v429 = vunpack.c.l.b16 %v88
    %v430 = vunpack.c.h.b16 %v88
    %v431 = vunpack.c.l.b16 %v89
    %v432 = vunpack.c.h.b16 %v89
    %v433 = vunpack.c.l.b16 %v90
    %v434 = vunpack.c.h.b16 %v90
    %v435 = vunpack.c.l.b16 %v91
    %v436 = vunpack.c.h.b16 %v91
    %v437 = vunpack.c.l.b16 %v92
    %v438 = vunpack.c.h.b16 %v92
    %v439 = vunpack.c.l.b16 %v93
    %v440 = vunpack.c.h.b16 %v93
    %v441 = vunpack.c.l.b16 %v94
    %v442 = vunpack.c.h.b16 %v94
    %v443 = vunpack.c.l.b16 %v95
    %v444 = vunpack.c.h.b16 %v95
    %v445 = vunpack.c.l.b16 %v96
    %v446 = vunpack.c.h.b16 %v96
    %v447 = vunpack.c.l.b16 %v97
    %v448 = vunpack.c.h.b16 %v97
    %v449 = vunpack.c.l.b16 %v98
    %v450 = vunpack.c.h.b16 %v98
    %v451 = vunpack.c.l.b16 %v99
    %v452 = vunpack.c.h.b16 %v99
    %v453 = vunpack.c.l.b16 %v100
    %v454 = vunpack.c.h.b16 %v100
    %v455 = vunpack.c.l.b16 %v101
    %v456 = vunpack.c.h.b16 %v101
    %v457 = vunpack.c.l.b16 %v102
    %v458 = vunpack.c.h.b16 %v102
    %v459 = vunpack.c.l.b16 %v103
    %v460 = vunpack.c.h.b16 %v103
    %v461 = vunpack.c.l.b16 %v104
    %v462 = vunpack.c.h.b16 %v104
    %v463 = vunpack.c.l.b16 %v105
    %v464 = vunpack.c.h.b16 %v105
    %v465 = vunpack.c.l.b16 %v106
    %v466 = vunpack.c.h.b16 %v106
    %v467 = vunpack.c.l.b16 %v107
    %v468 = vunpack.c.h.b16 %v107
    %v469 = vunpack.c.l.b16 %v108
    %v470 = vunpack.c.h.b16 %v108
    %v471 = vunpack.c.l.b16 %v109
    %v472 = vunpack.c.h.b16 %v109
    %v473 = vunpack.c.l.b16 %v110
    %v474 = vunpack.c.h.b16 %v110
    %v475 = vpack.c.b16 %v349, %v347
    %v476 = vpack.c.b16 %v350, %v348
    %v477 = vpack.c.b16 %v353, %v351
    %v478 = vpack.c.b16 %v354, %v352
    %v479 = vpack.c.b16 %v357, %v355
    %v480 = vpack.c.b16 %v358, %v356
    %v481 = vpack.c.b16 %v361, %v359
    %v482 = vpack.c.b16 %v362, %v360
    %v483 = vpack.c.b16 %v365, %v363
    %v484 = vpack.c.b16 %v366, %v364
    %v485 = vpack.c.b16 %v369, %v367
    %v486 = vpack.c.b16 %v370, %v368
    %v487 = vpack.c.b16 %v373, %v371
    %v488 = vpack.c.b16 %v374, %v372
    %v489 = vpack.c.b16 %v377, %v375
    %v490 = vpack.c.b16 %v378, %v376
    %v491 = vpack.c.b16 %v381, %v379
    %v492 = vpack.c.b16 %v382, %v380
    %v493 = vpack.c.b16 %v385, %v383
    %v494 = vpack.c.b16 %v386, %v384
    %v495 = vpack.c.b16 %v389, %v387
    %v496 = vpack.c.b16 %v390, %v388
    %v497 = vpack.c.b16 %v393, %v391
    %v498 = vpack.c.b16 %v394, %v392
    %v499 = vpack.c.b16 %v397, %v395
    %v500 = vpack.c.b16 %v398, %v396
    %v501 = vpack.c.b16 %v401, %v399
    %v502 = vpack.c.b16 %v402, %v400
    %v503 = vpack.c.b16 %v405, %v403
    %v504 = vpack.c.b16 %v406, %v404
    %v505 = vpack.c.b16 %v409, %v407
    %v506 = vpack.c.b16 %v410, %v408
    %v507 = vpack.c.b16 %v413, %v411
    %v508 = vpack.c.b16 %v414, %v412
    %v509 = vpack.c.b16 %v417, %v415
    %v510 = vpack.c.b16 %v418, %v416
    %v511 = vpack.c.b16 %v421, %v419
    %v512 = vpack.c.b16 %v422, %v420
    %v513 = vpack.c.b16 %v425, %v423
    %v514 = vpack.c.b16 %v426, %v424
    %v515 = vpack.c.b16 %v429, %v427
    %v516 = vpack.c.b16 %v430, %v428
    %v517 = vpack.c.b16 %v433, %v431
    %v518 = vpack.c.b16 %v434, %v432
    %v519 = vpack.c.b16 %v437, %v435
    %v520 = vpack.c.b16 %v438, %v436
    %v521 = vpack.c.b16 %v441, %v439
    %v522 = vpack.c.b16 %v442, %v440
    %v523 = vpack.c.b16 %v445, %v443
    %v524 = vpack.c.b16 %v446, %v444
    %v525 = vpack.c.b16 %v449, %v447
    %v526 = vpack.c.b16 %v450, %v448
    %v527 = vpack.c.b16 %v453, %v451
    %v528 = vpack.c.b16 %v454, %v452
    %v529 = vpack.c.b16 %v457, %v455
    %v530 = vpack.c.b16 %v458, %v456
    %v531 = vpack.c.b16 %v461, %v459
    %v532 = vpack.c.b16 %v462, %v460
    %v533 = vpack.c.b16 %v465, %v463
    %v534 = vpack.c.b16 %v466, %v464
    %v535 = vpack.c.b16 %v469, %v467
    %v536 = vpack.c.b16 %v470, %v468
    %v537 = vpack.c.b16 %v473, %v471
    %v538 = vpack.c.b16 %v474, %v472
    %603 = vmatprep.subr.bf16.mxu0 %v476
    %604 = vmatpush1.bf16.msra.mxu0 %v475
    %605 = vmatprep.subr.bf16.mxu0 %v478
    %606 = vmatpush1.bf16.msra.mxu0 %v477
    %607 = vmatprep.subr.bf16.mxu0 %v480
    %608 = vmatpush1.bf16.msra.mxu0 %v479
    %609 = vmatprep.subr.bf16.mxu0 %v482
    %610 = vmatpush1.bf16.msra.mxu0 %v481
    %611 = vmatprep.subr.bf16.mxu0 %v484
    %612 = vmatpush1.bf16.msra.mxu0 %v483
    %613 = vmatprep.subr.bf16.mxu0 %v486
    %614 = vmatpush1.bf16.msra.mxu0 %v485
    %615 = vmatprep.subr.bf16.mxu0 %v488
    %616 = vmatpush1.bf16.msra.mxu0 %v487
    %617 = vmatprep.subr.bf16.mxu0 %v490
    %618 = vmatpush1.bf16.msra.mxu0 %v489
    %619 = vmatprep.subr.bf16.mxu0 %v492
    %620 = vmatpush1.bf16.msra.mxu0 %v491
    %621 = vmatprep.subr.bf16.mxu0 %v494
    %622 = vmatpush1.bf16.msra.mxu0 %v493
    %623 = vmatprep.subr.bf16.mxu0 %v496
    %624 = vmatpush1.bf16.msra.mxu0 %v495
    %625 = vmatprep.subr.bf16.mxu0 %v498
    %626 = vmatpush1.bf16.msra.mxu0 %v497
    %627 = vmatprep.subr.bf16.mxu0 %v500
    %628 = vmatpush1.bf16.msra.mxu0 %v499
    %629 = vmatprep.subr.bf16.mxu0 %v502
    %630 = vmatpush1.bf16.msra.mxu0 %v501
    %631 = vmatprep.subr.bf16.mxu0 %v504
    %632 = vmatpush1.bf16.msra.mxu0 %v503
    %633 = vmatprep.subr.bf16.mxu0 %v506
    %634 = vmatpush1.bf16.msra.mxu0 %v505
    %635 = vmatprep.mubr.bf16.mxu0 %v220
    %636 = vmatmul.mubr.bf16.gmra.mrb[0].mxu0 %v219
    %v637 = vpop.f32.mrb[0].mxu0
    %v638 = vadd.f32 %v116, %v637
    %v639 = vpop.f32.mrb[0].mxu0
    %v640 = vadd.f32 %v120, %v639
    %v641 = vpop.f32.mrb[0].mxu0
    %v642 = vadd.f32 %v116, %v641
    %v643 = vpop.f32.mrb[0].mxu0
    %v644 = vadd.f32 %v120, %v643
    %645 = vmatprep.mubr.bf16.mxu0 %v224
    %646 = vmatmul.mubr.bf16.gmra.mrb[0].mxu0 %v223
    %v647 = vpop.f32.mrb[0].mxu0
    %v648 = vadd.f32 %v116, %v647
    %v649 = vpop.f32.mrb[0].mxu0
    %v650 = vadd.f32 %v120, %v649
    %v651 = vpop.f32.mrb[0].mxu0
    %v652 = vadd.f32 %v116, %v651
    %v653 = vpop.f32.mrb[0].mxu0
    %v654 = vadd.f32 %v120, %v653
    %655 = vmatprep.mubr.bf16.mxu0 %v228
    %656 = vmatmul.mubr.bf16.gmra.mrb[0].mxu0 %v227
    %v657 = vpop.f32.mrb[0].mxu0
    %v658 = vadd.f32 %v116, %v657
    %v659 = vpop.f32.mrb[0].mxu0
    %v660 = vadd.f32 %v120, %v659
    %v661 = vpop.f32.mrb[0].mxu0
    %v662 = vadd.f32 %v116, %v661
    %v663 = vpop.f32.mrb[0].mxu0
    %v664 = vadd.f32 %v120, %v663
    %665 = vmatprep.mubr.bf16.mxu0 %v232
    %666 = vmatmul.mubr.bf16.gmra.mrb[0].mxu0 %v231
    %v667 = vpop.f32.mrb[0].mxu0
    %v668 = vadd.f32 %v116, %v667
    %v669 = vpop.f32.mrb[0].mxu0
    %v670 = vadd.f32 %v120, %v669
    %v671 = vpop.f32.mrb[0].mxu0
    %v672 = vadd.f32 %v116, %v671
    %v673 = vpop.f32.mrb[0].mxu0
    %v674 = vadd.f32 %v120, %v673
    %675 = vmatprep.mubr.bf16.mxu0 %v236
    %676 = vmatmul.mubr.bf16.gmra.mrb[0].mxu0 %v235
    %v677 = vpop.f32.mrb[0].mxu0
    %v678 = vadd.f32 %v116, %v677
    %v679 = vpop.f32.mrb[0].mxu0
    %v680 = vadd.f32 %v120, %v679
    %v681 = vpop.f32.mrb[0].mxu0
    %v682 = vadd.f32 %v116, %v681
    %v683 = vpop.f32.mrb[0].mxu0
    %v684 = vadd.f32 %v120, %v683
    %685 = vmatprep.mubr.bf16.mxu0 %v240
    %686 = vmatmul.mubr.bf16.gmra.mrb[0].mxu0 %v239
    %v687 = vpop.f32.mrb[0].mxu0
    %v688 = vadd.f32 %v116, %v687
    %v689 = vpop.f32.mrb[0].mxu0
    %v690 = vadd.f32 %v120, %v689
    %v691 = vpop.f32.mrb[0].mxu0
    %v692 = vadd.f32 %v116, %v691
    %v693 = vpop.f32.mrb[0].mxu0
    %v694 = vadd.f32 %v120, %v693
    %695 = vmatprep.mubr.bf16.mxu0 %v244
    %696 = vmatmul.mubr.bf16.gmra.mrb[0].mxu0 %v243
    %v697 = vpop.f32.mrb[0].mxu0
    %v698 = vadd.f32 %v116, %v697
    %v699 = vpop.f32.mrb[0].mxu0
    %v700 = vadd.f32 %v120, %v699
    %v701 = vpop.f32.mrb[0].mxu0
    %v702 = vadd.f32 %v116, %v701
    %v703 = vpop.f32.mrb[0].mxu0
    %v704 = vadd.f32 %v120, %v703
    %705 = vmatprep.mubr.bf16.mxu0 %v248
    %706 = vmatmul.mubr.bf16.gmra.mrb[0].mxu0 %v247
    %v707 = vpop.f32.mrb[0].mxu0
    %v708 = vadd.f32 %v116, %v707
    %v709 = vpop.f32.mrb[0].mxu0
    %v710 = vadd.f32 %v120, %v709
    %v711 = vpop.f32.mrb[0].mxu0
    %v712 = vadd.f32 %v116, %v711
    %v713 = vpop.f32.mrb[0].mxu0
    %v714 = vadd.f32 %v120, %v713
    %715 = vdwg.mxu0
    %716 = vmatprep.subr.bf16.mxu0 %v508
    %717 = vmatpush1.bf16.msra.mxu0 %v507
    %718 = vmatprep.subr.bf16.mxu0 %v510
    %719 = vmatpush1.bf16.msra.mxu0 %v509
    %720 = vmatprep.subr.bf16.mxu0 %v512
    %721 = vmatpush1.bf16.msra.mxu0 %v511
    %722 = vmatprep.subr.bf16.mxu0 %v514
    %723 = vmatpush1.bf16.msra.mxu0 %v513
    %724 = vmatprep.subr.bf16.mxu0 %v516
    %725 = vmatpush1.bf16.msra.mxu0 %v515
    %726 = vmatprep.subr.bf16.mxu0 %v518
    %727 = vmatpush1.bf16.msra.mxu0 %v517
    %728 = vmatprep.subr.bf16.mxu0 %v520
    %729 = vmatpush1.bf16.msra.mxu0 %v519
    %730 = vmatprep.subr.bf16.mxu0 %v522
    %731 = vmatpush1.bf16.msra.mxu0 %v521
    %732 = vmatprep.subr.bf16.mxu0 %v524
    %733 = vmatpush1.bf16.msra.mxu0 %v523
    %734 = vmatprep.subr.bf16.mxu0 %v526
    %735 = vmatpush1.bf16.msra.mxu0 %v525
    %736 = vmatprep.subr.bf16.mxu0 %v528
    %737 = vmatpush1.bf16.msra.mxu0 %v527
    %738 = vmatprep.subr.bf16.mxu0 %v530
    %739 = vmatpush1.bf16.msra.mxu0 %v529
    %740 = vmatprep.subr.bf16.mxu0 %v532
    %741 = vmatpush1.bf16.msra.mxu0 %v531
    %742 = vmatprep.subr.bf16.mxu0 %v534
    %743 = vmatpush1.bf16.msra.mxu0 %v533
    %744 = vmatprep.subr.bf16.mxu0 %v536
    %745 = vmatpush1.bf16.msra.mxu0 %v535
    %746 = vmatprep.subr.bf16.mxu0 %v538
    %747 = vmatpush1.bf16.msra.mxu0 %v537
    %748 = vmatprep.mubr.bf16.mxu0 %v222
    %749 = vmatmul.mubr.bf16.gmra.mrb[0].mxu0 %v221
    %v750 = vpop.f32.mrb[0].mxu0
    %v751 = vadd.f32 %v638, %v750
    %v752 = vpop.f32.mrb[0].mxu0
    %v753 = vadd.f32 %v640, %v752
    %v754 = vpop.f32.mrb[0].mxu0
    %v755 = vadd.f32 %v642, %v754
    %v756 = vpop.f32.mrb[0].mxu0
    %v757 = vadd.f32 %v644, %v756
    %758 = vmatprep.mubr.bf16.mxu0 %v226
    %759 = vmatmul.mubr.bf16.gmra.mrb[0].mxu0 %v225
    %v760 = vpop.f32.mrb[0].mxu0
    %v761 = vadd.f32 %v648, %v760
    %v762 = vpop.f32.mrb[0].mxu0
    %v763 = vadd.f32 %v650, %v762
    %v764 = vpop.f32.mrb[0].mxu0
    %v765 = vadd.f32 %v652, %v764
    %v766 = vpop.f32.mrb[0].mxu0
    %v767 = vadd.f32 %v654, %v766
    %768 = vmatprep.mubr.bf16.mxu0 %v230
    %769 = vmatmul.mubr.bf16.gmra.mrb[0].mxu0 %v229
    %v770 = vpop.f32.mrb[0].mxu0
    %v771 = vadd.f32 %v658, %v770
    %v772 = vpop.f32.mrb[0].mxu0
    %v773 = vadd.f32 %v660, %v772
    %v774 = vpop.f32.mrb[0].mxu0
    %v775 = vadd.f32 %v662, %v774
    %v776 = vpop.f32.mrb[0].mxu0
    %v777 = vadd.f32 %v664, %v776
    %778 = vmatprep.mubr.bf16.mxu0 %v234
    %779 = vmatmul.mubr.bf16.gmra.mrb[0].mxu0 %v233
    %v780 = vpop.f32.mrb[0].mxu0
    %v781 = vadd.f32 %v668, %v780
    %v782 = vpop.f32.mrb[0].mxu0
    %v783 = vadd.f32 %v670, %v782
    %v784 = vpop.f32.mrb[0].mxu0
    %v785 = vadd.f32 %v672, %v784
    %v786 = vpop.f32.mrb[0].mxu0
    %v787 = vadd.f32 %v674, %v786
    %788 = vmatprep.mubr.bf16.mxu0 %v238
    %789 = vmatmul.mubr.bf16.gmra.mrb[0].mxu0 %v237
    %v790 = vpop.f32.mrb[0].mxu0
    %v791 = vadd.f32 %v678, %v790
    %v792 = vpop.f32.mrb[0].mxu0
    %v793 = vadd.f32 %v680, %v792
    %v794 = vpop.f32.mrb[0].mxu0
    %v795 = vadd.f32 %v682, %v794
    %v796 = vpop.f32.mrb[0].mxu0
    %v797 = vadd.f32 %v684, %v796
    %798 = vmatprep.mubr.bf16.mxu0 %v242
    %799 = vmatmul.mubr.bf16.gmra.mrb[0].mxu0 %v241
    %v800 = vpop.f32.mrb[0].mxu0
    %v801 = vadd.f32 %v688, %v800
    %v802 = vpop.f32.mrb[0].mxu0
    %v803 = vadd.f32 %v690, %v802
    %v804 = vpop.f32.mrb[0].mxu0
    %v805 = vadd.f32 %v692, %v804
    %v806 = vpop.f32.mrb[0].mxu0
    %v807 = vadd.f32 %v694, %v806
    %808 = vmatprep.mubr.bf16.mxu0 %v246
    %809 = vmatmul.mubr.bf16.gmra.mrb[0].mxu0 %v245
    %v810 = vpop.f32.mrb[0].mxu0
    %v811 = vadd.f32 %v698, %v810
    %v812 = vpop.f32.mrb[0].mxu0
    %v813 = vadd.f32 %v700, %v812
    %v814 = vpop.f32.mrb[0].mxu0
    %v815 = vadd.f32 %v702, %v814
    %v816 = vpop.f32.mrb[0].mxu0
    %v817 = vadd.f32 %v704, %v816
    %818 = vmatprep.mubr.bf16.mxu0 %v250
    %819 = vmatmul.mubr.bf16.gmra.mrb[0].mxu0 %v249
    %v820 = vpop.f32.mrb[0].mxu0
    %v821 = vadd.f32 %v708, %v820
    %v822 = vpop.f32.mrb[0].mxu0
    %v823 = vadd.f32 %v710, %v822
    %v824 = vpop.f32.mrb[0].mxu0
    %v825 = vadd.f32 %v712, %v824
    %v826 = vpop.f32.mrb[0].mxu0
    %v827 = vadd.f32 %v714, %v826
    %828 = vdwg.mxu0
    %829 = vst [vmem:[#allocation2] sm:$0xff] %v751
    %830 = vst [vmem:[#allocation2 + $0x8] sm:$0xff] %v753
    %831 = vst [vmem:[#allocation2 + $0x10] sm:$0xff] %v755
    %832 = vst [vmem:[#allocation2 + $0x18] sm:$0xff] %v757
    %833 = vst [vmem:[#allocation2 + $0x20] sm:$0xff] %v761
    %834 = vst [vmem:[#allocation2 + $0x28] sm:$0xff] %v763
    %835 = vst [vmem:[#allocation2 + $0x30] sm:$0xff] %v765
    %836 = vst [vmem:[#allocation2 + $0x38] sm:$0xff] %v767
    %837 = vst [vmem:[#allocation2 + $0x40] sm:$0xff] %v771
    %838 = vst [vmem:[#allocation2 + $0x48] sm:$0xff] %v773
    %839 = vst [vmem:[#allocation2 + $0x50] sm:$0xff] %v775
    %840 = vst [vmem:[#allocation2 + $0x58] sm:$0xff] %v777
    %841 = vst [vmem:[#allocation2 + $0x60] sm:$0xff] %v781
    %842 = vst [vmem:[#allocation2 + $0x68] sm:$0xff] %v783
    %843 = vst [vmem:[#allocation2 + $0x70] sm:$0xff] %v785
    %844 = vst [vmem:[#allocation2 + $0x78] sm:$0xff] %v787
    %845 = vst [vmem:[#allocation2 + $0x80] sm:$0xff] %v791
    %846 = vst [vmem:[#allocation2 + $0x88] sm:$0xff] %v793
    %847 = vst [vmem:[#allocation2 + $0x90] sm:$0xff] %v795
    %848 = vst [vmem:[#allocation2 + $0x98] sm:$0xff] %v797
    %849 = vst [vmem:[#allocation2 + $0xa0] sm:$0xff] %v801
    %850 = vst [vmem:[#allocation2 + $0xa8] sm:$0xff] %v803
    %851 = vst [vmem:[#allocation2 + $0xb0] sm:$0xff] %v805
    %852 = vst [vmem:[#allocation2 + $0xb8] sm:$0xff] %v807
    %853 = vst [vmem:[#allocation2 + $0xc0] sm:$0xff] %v811
    %854 = vst [vmem:[#allocation2 + $0xc8] sm:$0xff] %v813
    %855 = vst [vmem:[#allocation2 + $0xd0] sm:$0xff] %v815
    %856 = vst [vmem:[#allocation2 + $0xd8] sm:$0xff] %v817
    %857 = vst [vmem:[#allocation2 + $0xe0] sm:$0xff] %v821
    %858 = vst [vmem:[#allocation2 + $0xe8] sm:$0xff] %v823
    %859 = vst [vmem:[#allocation2 + $0xf0] sm:$0xff] %v825
    %860 = vst [vmem:[#allocation2 + $0xf8] sm:$0xff] %v827
    // Predicated region
    $region14: #{feature_grouping_forward.1} parent=1 // pred_check
      _
    $region15: #{feature_grouping_forward.1} parent=1 // pred_check_branch
      %862 = sbr.rel (0) target = $region17
    $region16: #{feature_grouping_forward.1} parent=1 // pred_region
      %s864 = ssub.s32 4096, 4096
      %865 = vsyncadd [#allocation3], %s864
      %s866 = sshll.u32 [#allocation2], 4
      %s867 = int_to_ptr.vmem [resolvable:$true] %s866
      %872 = dma.vmem_to_hbm [thread:$0]  %s867, 4096, %s3, [#allocation3], 256, 256, 16
    $region17: #{feature_grouping_forward.1} parent=1 // pred_fallthru
      _
    // Predicated region
    $region18: #{feature_grouping_forward.1} parent=1 // pred_check
      _
    $region19: #{feature_grouping_forward.1} parent=1 // pred_check_branch
      %874 = sbr.rel (0) target = $region21
    $region20: #{feature_grouping_forward.1} parent=1 // pred_region
      %875 = dma.done [#allocation3], 4096
    $region21: #{feature_grouping_forward.1} parent=1 // pred_fallthru
      _
    %876 = vsyncpa [#allocation3], 1

</llo_original>
